<compile_context>
chip_gen: v5e
topology: v5e:2x2
jax: 0.10.0
libtpu: 0.0.40
codegen_flags: <defaults>
</compile_context>

<pallas_src>
import functools
import math

import jax
import jax.numpy as jnp
from jax import lax
from jax.experimental import pallas as pl
from jax.experimental.pallas import tpu as pltpu


def _self_attn_kernel(x_ref, bias_ref, wqkv_ref, bqkv_ref, wp_ref, bp_ref,
                      o_ref, *, n_head, head_dim):
    H, hd = n_head, head_dim
    _, S, E = x_ref.shape

    x = x_ref[0]                                        # (S, E) bf16

    # Fused Q/K/V projection: one (S,E)@(E,3E) MXU matmul, f32 accumulation.
    qkv = jnp.dot(x, wqkv_ref[...], preferred_element_type=jnp.float32)
    qkv = qkv + bqkv_ref[...]                           # (S, 3E) f32

    inv_scale = 1.0 / math.sqrt(float(hd))
    q = qkv[:, :E] * inv_scale                          # scale folded into q once
    k = qkv[:, E:2 * E]
    v = qkv[:, 2 * E:]

    def split_heads(t):                                 # (S, E) -> (H, S, hd)
        return jnp.transpose(t.reshape(S, H, hd), (1, 0, 2))

    qh = split_heads(q).astype(jnp.bfloat16)
    kh = split_heads(k).astype(jnp.bfloat16)
    vh = split_heads(v).astype(jnp.bfloat16)

    def bmm(a, b, ca, cb):
        # Head-batched matmul (batch dim 0), f32 accumulation on the MXU.
        return lax.dot_general(a, b, (((ca,), (cb,)), ((0,), (0,))),
                               preferred_element_type=jnp.float32)

    # Scores: contract head_dim directly (no k transpose), batch over heads.
    s = bmm(qh, kh, 2, 2)                               # (H, S, S) f32
    s = s + bias_ref[...]                               # additive mask bias (0 / -10000)

    # Numerically stable softmax in f32; normalization deferred past P@V.
    m = jnp.max(s, axis=-1, keepdims=True)
    p = jnp.exp(s - m)
    inv_l = pl.reciprocal(jnp.sum(p, axis=-1, keepdims=True), approx=True)

    o_h = bmm(p.astype(jnp.bfloat16), vh, 2, 1)         # (H, S, hd) f32
    o_h = o_h * inv_l                                   # normalize once

    # merge_heads, then a single (S, H*hd)@(E, E) output projection.
    o_m = jnp.transpose(o_h, (1, 0, 2)).reshape(S, E).astype(jnp.bfloat16)
    out = jnp.dot(o_m, wp_ref[...], preferred_element_type=jnp.float32)
    out = out + bp_ref[...]                             # (S, E) f32

    o_ref[0] = out.astype(o_ref.dtype)


def self_attention(x, mask, wq, bq, wkv, bkv, wp, bp, *, n_head):
    B, S, E = x.shape
    H = n_head
    hd = E // H

    # Fuse q + kv projections into one (E, 3E) weight; columns = [q | k | v]
    # (matches torch's kv(...).split(n_embd, dim=-1) ordering).
    w_qkv = jnp.concatenate([wq, wkv], axis=1).astype(jnp.bfloat16)     # (E, 3E)
    b_qkv = jnp.concatenate([bq, bkv], axis=1).astype(jnp.float32)      # (1, 3E)

    # Pre-cast matmul operands to bf16 outside the kernel (halves DMA bytes).
    x_bf16 = x.astype(jnp.bfloat16)
    wp_bf16 = wp.astype(jnp.bfloat16)

    # Additive float mask bias (keep -> 0, masked -> -10000, matching mask_out_value).
    bias = jnp.where(mask[0, 0] != 0, 0.0, -10000.0).astype(jnp.float32)

    kernel = functools.partial(_self_attn_kernel, n_head=H, head_dim=hd)

    return pl.pallas_call(
        kernel,
        out_shape=jax.ShapeDtypeStruct((B, S, E), jnp.float32),
        grid=(B,),
        in_specs=[
            pl.BlockSpec((1, S, E), lambda b: (b, 0, 0)),    # x: per-batch block
            pl.BlockSpec((S, S), lambda b: (0, 0)),          # mask bias: resident
            pl.BlockSpec((E, 3 * E), lambda b: (0, 0)),      # fused Wqkv: resident
            pl.BlockSpec((1, 3 * E), lambda b: (0, 0)),      # fused bqkv: resident
            pl.BlockSpec((E, E), lambda b: (0, 0)),          # Wproj: resident
            pl.BlockSpec((1, E), lambda b: (0, 0)),          # bproj: resident
        ],
        out_specs=pl.BlockSpec((1, S, E), lambda b: (b, 0, 0)),
        compiler_params=pltpu.CompilerParams(
            dimension_semantics=("parallel",),               # shard batch across TCs (v7x)
            vmem_limit_bytes=32 * 1024 * 1024,
        ),
    )(x_bf16, bias, w_qkv, b_qkv, wp_bf16, bp)


def self_attention_ref(x, mask, wq, bq, wkv, bkv, wp, bp, *, n_head):
    """Pure-JAX f32 reference mirroring the PyTorch module (eval mode)."""
    B, S, E = x.shape
    hd = E // n_head
    q = x @ wq + bq[0]
    kv = x @ wkv + bkv[0]
    k, v = kv[..., :E], kv[..., E:]

    def split_heads(t):
        return t.reshape(B, S, n_head, hd).transpose(0, 2, 1, 3)

    qh, kh, vh = split_heads(q), split_heads(k), split_heads(v)
    scores = jnp.einsum("bhqd,bhkd->bhqk", qh, kh) / math.sqrt(float(hd))
    scores = jnp.where(mask != 0, scores, jnp.float32(-10000.0))
    w = jax.nn.softmax(scores, axis=-1)
    o = jnp.einsum("bhqk,bhkd->bhqd", w, vh)
    o = o.transpose(0, 2, 1, 3).reshape(B, S, E)
    return o @ wp + bp[0]


if __name__ == "__main__":
    # Small shapes consistent with the module: batch=2, seq=8, n_embd=32, n_head=4
    B, S, E, H = 2, 8, 32, 4

    key = jax.random.PRNGKey(0)
    ks = jax.random.split(key, 7)

    x = jax.random.normal(ks[0], (B, S, E), dtype=jnp.float32)

    # Deterministic parameter init (synthetic; not loaded from a checkpoint)
    scale = 0.02
    wq = scale * jax.random.normal(ks[1], (E, E), dtype=jnp.float32)
    bq = scale * jax.random.normal(ks[2], (1, E), dtype=jnp.float32)
    wkv = scale * jax.random.normal(ks[3], (E, 2 * E), dtype=jnp.float32)
    bkv = scale * jax.random.normal(ks[4], (1, 2 * E), dtype=jnp.float32)
    wp = scale * jax.random.normal(ks[5], (E, E), dtype=jnp.float32)
    bp = scale * jax.random.normal(ks[6], (1, E), dtype=jnp.float32)

    # Causal attention mask (1,1,S,S): nonzero = attend, zero = masked (-10000)
    mask = jnp.tril(jnp.ones((S, S), dtype=jnp.int32))[None, None]

    out = self_attention(x, mask, wq, bq, wkv, bkv, wp, bp, n_head=H)
    out = jax.block_until_ready(out)

    ref = self_attention_ref(x, mask, wq, bq, wkv, bkv, wp, bp, n_head=H)
    assert out.shape == (B, S, E)
    # bf16 MXU operands (f32 accumulate) + approx reciprocal -> compare with a
    # correspondingly relaxed tolerance against the f32 reference.
    assert jnp.allclose(out, ref, atol=3e-3, rtol=3e-2), "mismatch vs reference"

    # TODO(synk): attn_dropout / resid_dropout are identity (eval mode); training-mode
    # dropout would need pltpu.prng_* inside the kernel.
    print("KERNEL_OK")
</pallas_src>

<mosaic_0001>
module attributes {stable_mosaic.version = 11 : i64} {
  func.func @_self_attn_kernel(%arg0: i32, %arg1: memref<1x8x32xbf16, #tpu.memory_space<vmem>>, %arg2: memref<8x8xf32, #tpu.memory_space<vmem>>, %arg3: memref<32x96xbf16, #tpu.memory_space<vmem>>, %arg4: memref<1x96xf32, #tpu.memory_space<vmem>>, %arg5: memref<32x32xbf16, #tpu.memory_space<vmem>>, %arg6: memref<1x32xf32, #tpu.memory_space<vmem>>, %arg7: memref<1x8x32xf32, #tpu.memory_space<vmem>>) attributes {dimension_semantics = [#tpu.dimension_semantics<parallel>], iteration_bounds = array<i64: 2>, scalar_prefetch = 0 : i64, scratch_operands = 0 : i64, tpu.core_type = #tpu.core_type<tc>, window_params = [{transform_indices = @transform_0, window_bounds = array<i64: 1, 8, 32>}, {pipeline_mode = #tpu.pipeline_mode<synchronous>, transform_indices = @transform_1, window_bounds = array<i64: 8, 8>}, {pipeline_mode = #tpu.pipeline_mode<synchronous>, transform_indices = @transform_2, window_bounds = array<i64: 32, 96>}, {pipeline_mode = #tpu.pipeline_mode<synchronous>, transform_indices = @transform_3, window_bounds = array<i64: 1, 96>}, {pipeline_mode = #tpu.pipeline_mode<synchronous>, transform_indices = @transform_4, window_bounds = array<i64: 32, 32>}, {pipeline_mode = #tpu.pipeline_mode<synchronous>, transform_indices = @transform_5, window_bounds = array<i64: 1, 32>}, {transform_indices = @transform_6, window_bounds = array<i64: 1, 8, 32>}]} {
    %c0 = arith.constant 0 : index
    %c0_0 = arith.constant 0 : index
    %c0_1 = arith.constant 0 : index
    %0 = vector.load %arg1[%c0, %c0_0, %c0_1] : memref<1x8x32xbf16, #tpu.memory_space<vmem>>, vector<1x8x32xbf16>
    %1 = vector.shape_cast %0 : vector<1x8x32xbf16> to vector<8x32xbf16>
    %c0_2 = arith.constant 0 : index
    %c0_3 = arith.constant 0 : index
    %2 = vector.load %arg3[%c0_2, %c0_3] : memref<32x96xbf16, #tpu.memory_space<vmem>>, vector<32x96xbf16>
    %cst = arith.constant dense<0.000000e+00> : vector<8x96xf32>
    %3 = tpu.matmul %1, %2, %cst {dimension_numbers = #tpu.dot_dimension_numbers<[1], [0], [0], [1], [0, 0, 1, 1], [], []>} : vector<8x32xbf16>, vector<32x96xbf16>, vector<8x96xf32> -> vector<8x96xf32>
    %c0_4 = arith.constant 0 : index
    %c0_5 = arith.constant 0 : index
    %4 = vector.load %arg4[%c0_4, %c0_5] : memref<1x96xf32, #tpu.memory_space<vmem>>, vector<1x96xf32>
    %5 = vector.broadcast %4 : vector<1x96xf32> to vector<8x96xf32>
    %6 = arith.addf %3, %5 : vector<8x96xf32>
    %7 = vector.extract_strided_slice %6 {offsets = [0, 0], sizes = [8, 32], strides = [1, 1]} : vector<8x96xf32> to vector<8x32xf32>
    %cst_6 = arith.constant 0.353553385 : f32
    %8 = vector.broadcast %cst_6 : f32 to vector<8x32xf32>
    %9 = arith.mulf %7, %8 : vector<8x32xf32>
    %10 = vector.extract_strided_slice %6 {offsets = [0, 32], sizes = [8, 32], strides = [1, 1]} : vector<8x96xf32> to vector<8x32xf32>
    %11 = vector.extract_strided_slice %6 {offsets = [0, 64], sizes = [8, 32], strides = [1, 1]} : vector<8x96xf32> to vector<8x32xf32>
    %12 = vector.shape_cast %9 : vector<8x32xf32> to vector<8x4x8xf32>
    %13 = tpu.transpose %12, [1, 0, 2] : vector<8x4x8xf32> -> vector<4x8x8xf32>
    %14 = arith.truncf %13 : vector<4x8x8xf32> to vector<4x8x8xbf16>
    %15 = vector.shape_cast %10 : vector<8x32xf32> to vector<8x4x8xf32>
    %16 = tpu.transpose %15, [1, 0, 2] : vector<8x4x8xf32> -> vector<4x8x8xf32>
    %17 = arith.truncf %16 : vector<4x8x8xf32> to vector<4x8x8xbf16>
    %18 = vector.shape_cast %11 : vector<8x32xf32> to vector<8x4x8xf32>
    %19 = tpu.transpose %18, [1, 0, 2] : vector<8x4x8xf32> -> vector<4x8x8xf32>
    %20 = arith.truncf %19 : vector<4x8x8xf32> to vector<4x8x8xbf16>
    %cst_7 = arith.constant dense<0.000000e+00> : vector<4x8x8xf32>
    %21 = tpu.matmul %14, %17, %cst_7 {dimension_numbers = #tpu.dot_dimension_numbers<[2], [2], [1], [1], [0, 0, 0, 1, 1, 1], [0], [0]>} : vector<4x8x8xbf16>, vector<4x8x8xbf16>, vector<4x8x8xf32> -> vector<4x8x8xf32>
    %c0_8 = arith.constant 0 : index
    %c0_9 = arith.constant 0 : index
    %22 = vector.load %arg2[%c0_8, %c0_9] : memref<8x8xf32, #tpu.memory_space<vmem>>, vector<8x8xf32>
    %23 = vector.shape_cast %22 : vector<8x8xf32> to vector<1x8x8xf32>
    %24 = vector.broadcast %23 : vector<1x8x8xf32> to vector<4x8x8xf32>
    %25 = arith.addf %21, %24 : vector<4x8x8xf32>
    %cst_10 = arith.constant dense<0xFF800000> : vector<4x8xf32>
    %26 = vector.multi_reduction <maximumf>, %25, %cst_10 [2] : vector<4x8x8xf32> to vector<4x8xf32>
    %27 = vector.shape_cast %26 : vector<4x8xf32> to vector<4x8x1xf32>
    %28 = vector.broadcast %27 : vector<4x8x1xf32> to vector<4x8x8xf32>
    %29 = arith.subf %25, %28 : vector<4x8x8xf32>
    %30 = math.exp %29 : vector<4x8x8xf32>
    %cst_11 = arith.constant dense<0.000000e+00> : vector<4x8xf32>
    %31 = vector.multi_reduction <add>, %30, %cst_11 [2] : vector<4x8x8xf32> to vector<4x8xf32>
    %32 = vector.shape_cast %31 : vector<4x8xf32> to vector<4x8x1xf32>
    %33 = tpu.reciprocal %32 {approx = true} : vector<4x8x1xf32> -> vector<4x8x1xf32>
    %34 = arith.truncf %30 : vector<4x8x8xf32> to vector<4x8x8xbf16>
    %cst_12 = arith.constant dense<0.000000e+00> : vector<4x8x8xf32>
    %35 = tpu.matmul %34, %20, %cst_12 {dimension_numbers = #tpu.dot_dimension_numbers<[2], [1], [1], [2], [0, 0, 0, 1, 1, 2], [0], [0]>} : vector<4x8x8xbf16>, vector<4x8x8xbf16>, vector<4x8x8xf32> -> vector<4x8x8xf32>
    %36 = vector.broadcast %33 : vector<4x8x1xf32> to vector<4x8x8xf32>
    %37 = arith.mulf %35, %36 : vector<4x8x8xf32>
    %38 = tpu.transpose %37, [1, 0, 2] : vector<4x8x8xf32> -> vector<8x4x8xf32>
    %39 = vector.shape_cast %38 : vector<8x4x8xf32> to vector<8x32xf32>
    %40 = arith.truncf %39 : vector<8x32xf32> to vector<8x32xbf16>
    %c0_13 = arith.constant 0 : index
    %c0_14 = arith.constant 0 : index
    %41 = vector.load %arg5[%c0_13, %c0_14] : memref<32x32xbf16, #tpu.memory_space<vmem>>, vector<32x32xbf16>
    %cst_15 = arith.constant dense<0.000000e+00> : vector<8x32xf32>
    %42 = tpu.matmul %40, %41, %cst_15 {dimension_numbers = #tpu.dot_dimension_numbers<[1], [0], [0], [1], [0, 0, 1, 1], [], []>} : vector<8x32xbf16>, vector<32x32xbf16>, vector<8x32xf32> -> vector<8x32xf32>
    %c0_16 = arith.constant 0 : index
    %c0_17 = arith.constant 0 : index
    %43 = vector.load %arg6[%c0_16, %c0_17] : memref<1x32xf32, #tpu.memory_space<vmem>>, vector<1x32xf32>
    %44 = vector.broadcast %43 : vector<1x32xf32> to vector<8x32xf32>
    %45 = arith.addf %42, %44 : vector<8x32xf32>
    %c0_18 = arith.constant 0 : index
    %c0_19 = arith.constant 0 : index
    %c0_20 = arith.constant 0 : index
    %46 = vector.load %arg7[%c0_18, %c0_19, %c0_20] : memref<1x8x32xf32, #tpu.memory_space<vmem>>, vector<1x8x32xf32>
    %47 = vector.shape_cast %46 : vector<1x8x32xf32> to vector<8x32xf32>
    %48 = vector.shape_cast %45 : vector<8x32xf32> to vector<1x8x32xf32>
    tpu.vector_store %arg7[%c0_18, %c0_19, %c0_20], %48 {strides = array<i32>} : memref<1x8x32xf32, #tpu.memory_space<vmem>>, vector<1x8x32xf32>,
    return
  }
  func.func @transform_0(%arg0: i32) -> (i32, i32, i32) {
    %c0_i32 = arith.constant 0 : i32
    %c0_i32_0 = arith.constant 0 : i32
    %c0_i32_1 = arith.constant 0 : i32
    return %arg0, %c0_i32, %c0_i32_0 : i32, i32, i32
  }
  func.func @transform_1(%arg0: i32) -> (i32, i32) {
    %c0_i32 = arith.constant 0 : i32
    %c0_i32_0 = arith.constant 0 : i32
    %c0_i32_1 = arith.constant 0 : i32
    return %c0_i32, %c0_i32_0 : i32, i32
  }
  func.func @transform_2(%arg0: i32) -> (i32, i32) {
    %c0_i32 = arith.constant 0 : i32
    %c0_i32_0 = arith.constant 0 : i32
    %c0_i32_1 = arith.constant 0 : i32
    return %c0_i32, %c0_i32_0 : i32, i32
  }
  func.func @transform_3(%arg0: i32) -> (i32, i32) {
    %c0_i32 = arith.constant 0 : i32
    %c0_i32_0 = arith.constant 0 : i32
    %c0_i32_1 = arith.constant 0 : i32
    return %c0_i32, %c0_i32_0 : i32, i32
  }
  func.func @transform_4(%arg0: i32) -> (i32, i32) {
    %c0_i32 = arith.constant 0 : i32
    %c0_i32_0 = arith.constant 0 : i32
    %c0_i32_1 = arith.constant 0 : i32
    return %c0_i32, %c0_i32_0 : i32, i32
  }
  func.func @transform_5(%arg0: i32) -> (i32, i32) {
    %c0_i32 = arith.constant 0 : i32
    %c0_i32_0 = arith.constant 0 : i32
    %c0_i32_1 = arith.constant 0 : i32
    return %c0_i32, %c0_i32_0 : i32, i32
  }
  func.func @transform_6(%arg0: i32) -> (i32, i32, i32) {
    %c0_i32 = arith.constant 0 : i32
    %c0_i32_0 = arith.constant 0 : i32
    %c0_i32_1 = arith.constant 0 : i32
    return %arg0, %c0_i32, %c0_i32_0 : i32, i32, i32
  }
}

</mosaic_0001>

<llo_original>
// kernel: tpu_custom_call.1
$region0: #{tpu_custom_call.1}
  #allocation0 [shape = 'u32[]', space=smem, size = 0x4, offset = 0x4, fixed_abs, tag = 'smem constant byte address 0x4 - core index']
  #allocation1 [shape = 'u32[72,128]{1,0:T(1,128)}', space=vmem, size = 0x9000, scoped, tag = 'internal scratch']
  %s0 = inlined_call_operand.hbm [shape: bf16[2,8,32], index: 0, kind: input, shape index: {}]
  %s1 = inlined_call_operand.hbm [shape: f32[8,8], index: 1, kind: input, shape index: {}]
  %s2 = inlined_call_operand.hbm [shape: bf16[32,96], index: 2, kind: input, shape index: {}]
  %s3 = inlined_call_operand.vmem [shape: f32[1,96], index: 3, kind: input, shape index: {}]
  %s4 = inlined_call_operand.hbm [shape: bf16[32,32], index: 4, kind: input, shape index: {}]
  %s5 = inlined_call_operand.vmem [shape: f32[1,32], index: 5, kind: input, shape index: {}]
  %s6 = inlined_call_operand.hbm [shape: f32[2,8,32], index: 6, kind: output, shape index: {}]
  %s7 = sld [smem:[#allocation0]]
  $region73: #{tpu_custom_call.1} parent=0
    _
  %s9 = ssub.s32 1, %s7
  %s10 = scalar_select 0, %s9, %s7
  $region1: #{tpu_custom_call.1} parent=0
    #allocation2 [shape = 'u8[4096]{0}', space=vmem, size = 0x1000, scoped, tag = 'input window, operand 0']
    #allocation3 [shape = 's32[2]{0}', space=sflag, size = 0x8, scoped, tag = 'scoped memory for tpu_custom_call.1']
    #allocation4 [shape = 's32[2]{0}', space=sflag, size = 0x8, scoped, tag = 'scoped memory for tpu_custom_call.1']
    #allocation5 [shape = 'u8[4096]{0}', space=vmem, size = 0x1000, scoped, tag = 'input window, operand 1, single buffered']
    #allocation6 [shape = 's32[1]{0}', space=sflag, size = 0x4, scoped, tag = 'scoped memory for tpu_custom_call.1']
    #allocation7 [shape = 'u8[8192]{0}', space=vmem, size = 0x2000, scoped, tag = 'input window, operand 2, single buffered']
    #allocation8 [shape = 'u8[8192]{0}', space=vmem, size = 0x2000, scoped, tag = 'input window, operand 4, single buffered']
    #allocation9 [shape = 's32[1]{0}', space=sflag, size = 0x4, scoped, tag = 'scoped memory for tpu_custom_call.1']
    #allocation10 [shape = 'u8[8192]{0}', space=vmem, size = 0x2000, scoped, tag = 'output window, operand 0']
    %11 = vsyncpa [#allocation3], 0
    %s12 = scalar_lea.sflag [#allocation3], 1
    %13 = vsyncpa %s12, 0
    %14 = vsyncpa [#allocation6], 0
    %15 = vsyncpa [#allocation9], 0
    %16 = vsyncpa [#allocation4], 0
    %s17 = scalar_lea.sflag [#allocation4], 1
    %18 = vsyncpa %s17, 0
    loop: start=0, step=1, limit=4
    $region2: #{tpu_custom_call.1} parent=1 // loop_pre_header
      _
    $region3: #{tpu_custom_call.1} parent=1 // loop_header
      %s20 = sphi 0, %s24
      %p21 = scmp.ge.s32.totalorder %s20, 4
      %s30 = sphi 0, %s32
      %s33 = sphi 0, %s30
      %s34 = sphi 0, %s33
      %s50 = sphi 0, %s34
      %s54 = sphi 0, %s54
      %s56 = sphi 0, %s54
      %s57 = sphi 0, %s56
      %s71 = sphi 0, %s57
      %s75 = sphi 0, %s75
      %s77 = sphi 0, %s75
      %s78 = sphi 0, %s77
      %s92 = sphi 0, %s78
      %s96 = sphi 0, %s96
      %s98 = sphi 0, %s96
      %s99 = sphi 0, %s98
      %s113 = sphi 0, %s99
      %s117 = sphi 0, %s117
      %s119 = sphi 0, %s117
      %s120 = sphi 0, %s119
      %s134 = sphi 0, %s120
      %s138 = sphi 0, %s138
      %s140 = sphi 0, %s138
      %s141 = sphi 0, %s140
      %s155 = sphi 0, %s141
      %s161 = sphi 0, %s163
      %s164 = sphi 0, %s161
      %s165 = sphi 0, %s164
      %s181 = sphi 0, %s165
    $region4: #{tpu_custom_call.1} parent=1 // loop_header_branch
      %23 = sbr.rel (%p21) target = $region8
    $region5: #{tpu_custom_call.1} parent=1 // loop_body
      %s25 = ssub.s32 %s20, 1
      %s26 = ssub.s32 %s20, 2
      %s27 = sadd.s32 %s20, 1
      %s28 = ssub.s32 %s20, %s27
      %p29 = scmp.eq.s32.totalorder %s28, 0
      %s31 = sadd.s32 %s30, 1
      %s32 = scalar_select %p29, %s30, %s31
      %p35 = pneg %p29
      %p36 = scmp.eq.s32.totalorder %s20, 1
      %p37 = por %p35, %p36
      %p38 = scmp.ne.s32.totalorder %s30, %s33
      %p39 = scmp.eq.s32.totalorder %s20, 0
      %p40 = por %p38, %p39
      %p41 = scmp.ne.s32.totalorder %s30, %s33
      %p42 = scmp.eq.s32.totalorder %s25, 1
      %p43 = por %p41, %p42
      %p44 = scmp.ne.s32.totalorder %s33, %s34
      %p45 = scmp.eq.s32.totalorder %s25, 0
      %p46 = por %p44, %p45
      %p47 = scmp.ne.s32.totalorder %s33, %s34
      %p48 = scmp.eq.s32.totalorder %s26, 1
      %p49 = por %p47, %p48
      %p51 = scmp.ne.s32.totalorder %s34, %s50
      %p52 = scmp.eq.s32.totalorder %s26, 0
      %p53 = por %p51, %p52
      %s55 = sadd.s32 %s54, 1
      %p58 = scmp.eq.s32.totalorder %s20, 1
      %p59 = scmp.ne.s32.totalorder %s54, %s56
      %p60 = scmp.eq.s32.totalorder %s20, 0
      %p61 = por %p59, %p60
      %p62 = scmp.ne.s32.totalorder %s54, %s56
      %p63 = scmp.eq.s32.totalorder %s25, 1
      %p64 = por %p62, %p63
      %p65 = scmp.ne.s32.totalorder %s56, %s57
      %p66 = scmp.eq.s32.totalorder %s25, 0
      %p67 = por %p65, %p66
      %p68 = scmp.ne.s32.totalorder %s56, %s57
      %p69 = scmp.eq.s32.totalorder %s26, 1
      %p70 = por %p68, %p69
      %p72 = scmp.ne.s32.totalorder %s57, %s71
      %p73 = scmp.eq.s32.totalorder %s26, 0
      %p74 = por %p72, %p73
      %s76 = sadd.s32 %s75, 1
      %p79 = scmp.eq.s32.totalorder %s20, 1
      %p80 = scmp.ne.s32.totalorder %s75, %s77
      %p81 = scmp.eq.s32.totalorder %s20, 0
      %p82 = por %p80, %p81
      %p83 = scmp.ne.s32.totalorder %s75, %s77
      %p84 = scmp.eq.s32.totalorder %s25, 1
      %p85 = por %p83, %p84
      %p86 = scmp.ne.s32.totalorder %s77, %s78
      %p87 = scmp.eq.s32.totalorder %s25, 0
      %p88 = por %p86, %p87
      %p89 = scmp.ne.s32.totalorder %s77, %s78
      %p90 = scmp.eq.s32.totalorder %s26, 1
      %p91 = por %p89, %p90
      %p93 = scmp.ne.s32.totalorder %s78, %s92
      %p94 = scmp.eq.s32.totalorder %s26, 0
      %p95 = por %p93, %p94
      %s97 = sadd.s32 %s96, 1
      %p100 = scmp.eq.s32.totalorder %s20, 1
      %p101 = scmp.ne.s32.totalorder %s96, %s98
      %p102 = scmp.eq.s32.totalorder %s20, 0
      %p103 = por %p101, %p102
      %p104 = scmp.ne.s32.totalorder %s96, %s98
      %p105 = scmp.eq.s32.totalorder %s25, 1
      %p106 = por %p104, %p105
      %p107 = scmp.ne.s32.totalorder %s98, %s99
      %p108 = scmp.eq.s32.totalorder %s25, 0
      %p109 = por %p107, %p108
      %p110 = scmp.ne.s32.totalorder %s98, %s99
      %p111 = scmp.eq.s32.totalorder %s26, 1
      %p112 = por %p110, %p111
      %p114 = scmp.ne.s32.totalorder %s99, %s113
      %p115 = scmp.eq.s32.totalorder %s26, 0
      %p116 = por %p114, %p115
      %s118 = sadd.s32 %s117, 1
      %p121 = scmp.eq.s32.totalorder %s20, 1
      %p122 = scmp.ne.s32.totalorder %s117, %s119
      %p123 = scmp.eq.s32.totalorder %s20, 0
      %p124 = por %p122, %p123
      %p125 = scmp.ne.s32.totalorder %s117, %s119
      %p126 = scmp.eq.s32.totalorder %s25, 1
      %p127 = por %p125, %p126
      %p128 = scmp.ne.s32.totalorder %s119, %s120
      %p129 = scmp.eq.s32.totalorder %s25, 0
      %p130 = por %p128, %p129
      %p131 = scmp.ne.s32.totalorder %s119, %s120
      %p132 = scmp.eq.s32.totalorder %s26, 1
      %p133 = por %p131, %p132
      %p135 = scmp.ne.s32.totalorder %s120, %s134
      %p136 = scmp.eq.s32.totalorder %s26, 0
      %p137 = por %p135, %p136
      %s139 = sadd.s32 %s138, 1
      %p142 = scmp.eq.s32.totalorder %s20, 1
      %p143 = scmp.ne.s32.totalorder %s138, %s140
      %p144 = scmp.eq.s32.totalorder %s20, 0
      %p145 = por %p143, %p144
      %p146 = scmp.ne.s32.totalorder %s138, %s140
      %p147 = scmp.eq.s32.totalorder %s25, 1
      %p148 = por %p146, %p147
      %p149 = scmp.ne.s32.totalorder %s140, %s141
      %p150 = scmp.eq.s32.totalorder %s25, 0
      %p151 = por %p149, %p150
      %p152 = scmp.ne.s32.totalorder %s140, %s141
      %p153 = scmp.eq.s32.totalorder %s26, 1
      %p154 = por %p152, %p153
      %p156 = scmp.ne.s32.totalorder %s141, %s155
      %p157 = scmp.eq.s32.totalorder %s26, 0
      %p158 = por %p156, %p157
      %s159 = ssub.s32 %s20, %s27
      %p160 = scmp.eq.s32.totalorder %s159, 0
      %s162 = sadd.s32 %s161, 1
      %s163 = scalar_select %p160, %s161, %s162
      %p166 = pneg %p160
      %p167 = scmp.eq.s32.totalorder %s20, 1
      %p168 = por %p166, %p167
      %p169 = scmp.ne.s32.totalorder %s161, %s164
      %p170 = scmp.eq.s32.totalorder %s20, 0
      %p171 = por %p169, %p170
      %p172 = scmp.ne.s32.totalorder %s161, %s164
      %p173 = scmp.eq.s32.totalorder %s25, 1
      %p174 = por %p172, %p173
      %p175 = scmp.ne.s32.totalorder %s164, %s165
      %p176 = scmp.eq.s32.totalorder %s25, 0
      %p177 = por %p175, %p176
      %p178 = scmp.ne.s32.totalorder %s164, %s165
      %p179 = scmp.eq.s32.totalorder %s26, 1
      %p180 = por %p178, %p179
      %p182 = scmp.ne.s32.totalorder %s165, %s181
      %p183 = scmp.eq.s32.totalorder %s26, 0
      %p184 = por %p182, %p183
      %p185 = scmp.le.s32.totalorder 1, %s20
      %p186 = scmp.lt.s32.totalorder %s20, 3
      %p187 = pnand %p185, %p186
      %p188 = pneg %p187
      // Predicated region
      $region9: #{tpu_custom_call.1} parent=5 // pred_check
        _
      $region10: #{tpu_custom_call.1} parent=5 // pred_check_branch
        %190 = sbr.rel (%p187) target = $region12
      $region11: #{tpu_custom_call.1} parent=5 // pred_region
        %s191 = ssub.s32 %s20, 1
        // Predicated region
        $region13: #{tpu_custom_call.1} parent=11 // pred_check
          %p192 = pneg %p67
        $region14: #{tpu_custom_call.1} parent=11 // pred_check_branch
          %194 = sbr.rel (%p192) target = $region16
        $region15: #{tpu_custom_call.1} parent=11 // pred_region
          %196 = vsyncadd [#allocation6], 0
          %s198 = sshll.u32 %s1, 4
          %s199 = int_to_ptr.hbm [resolvable:$true] %s198
          %s200 = sshll.u32 [#allocation5], 4
          %s201 = int_to_ptr.vmem [resolvable:$true] %s200
          %203 = dma.hbm_to_vmem [thread:$0]  %s199, 128, %s201, [#allocation6]
        $region16: #{tpu_custom_call.1} parent=11 // pred_fallthru
          _
        // Predicated region
        $region17: #{tpu_custom_call.1} parent=11 // pred_check
          %p204 = pneg %p88
        $region18: #{tpu_custom_call.1} parent=11 // pred_check_branch
          %206 = sbr.rel (%p204) target = $region20
        $region19: #{tpu_custom_call.1} parent=11 // pred_region
          %208 = vsyncadd [#allocation6], 0
          %s209 = sshll.u32 %s2, 4
          %s210 = int_to_ptr.hbm [resolvable:$true] %s209
          %s211 = sshll.u32 [#allocation7], 4
          %s212 = int_to_ptr.vmem [resolvable:$true] %s211
          %217 = dma.hbm_to_vmem [thread:$0]  %s210, 256, %s212, [#allocation6], 64, 64, 4
        $region20: #{tpu_custom_call.1} parent=11 // pred_fallthru
          _
        // Predicated region
        $region21: #{tpu_custom_call.1} parent=11 // pred_check
          %p218 = pneg %p109
        $region22: #{tpu_custom_call.1} parent=11 // pred_check_branch
          %220 = sbr.rel (%p218) target = $region24
        $region23: #{tpu_custom_call.1} parent=11 // pred_region
          _
        $region24: #{tpu_custom_call.1} parent=11 // pred_fallthru
          _
        // Predicated region
        $region25: #{tpu_custom_call.1} parent=11 // pred_check
          %p221 = pneg %p130
        $region26: #{tpu_custom_call.1} parent=11 // pred_check_branch
          %223 = sbr.rel (%p221) target = $region28
        $region27: #{tpu_custom_call.1} parent=11 // pred_region
          %225 = vsyncadd [#allocation9], 0
          %s226 = sshll.u32 %s4, 4
          %s227 = int_to_ptr.hbm [resolvable:$true] %s226
          %s228 = sshll.u32 [#allocation8], 4
          %s229 = int_to_ptr.vmem [resolvable:$true] %s228
          %234 = dma.hbm_to_vmem [thread:$0]  %s227, 256, %s229, [#allocation9], 64, 64, 4
        $region28: #{tpu_custom_call.1} parent=11 // pred_fallthru
          _
        // Predicated region
        $region29: #{tpu_custom_call.1} parent=11 // pred_check
          %p235 = pneg %p151
        $region30: #{tpu_custom_call.1} parent=11 // pred_check_branch
          %237 = sbr.rel (%p235) target = $region32
        $region31: #{tpu_custom_call.1} parent=11 // pred_region
          _
        $region32: #{tpu_custom_call.1} parent=11 // pred_fallthru
          _
      $region12: #{tpu_custom_call.1} parent=5 // pred_fallthru
        _
      %p238 = scmp.lt.s32.totalorder %s20, 2
      // Predicated region
      $region33: #{tpu_custom_call.1} parent=5 // pred_check
        %p239 = pneg %p238
      $region34: #{tpu_custom_call.1} parent=5 // pred_check_branch
        %241 = sbr.rel (%p239) target = $region36
      $region35: #{tpu_custom_call.1} parent=5 // pred_region
        // Predicated region
        $region37: #{tpu_custom_call.1} parent=35 // pred_check
          %p242 = pneg %p40
        $region38: #{tpu_custom_call.1} parent=35 // pred_check_branch
          %244 = sbr.rel (%p242) target = $region40
        $region39: #{tpu_custom_call.1} parent=35 // pred_region
          %s245 = sand.u32 %s30, 1
          %s246 = scalar_lea.sflag [#allocation3], %s245
          %s247 = sand.u32 %s30, 1
          %s248 = smul.addr %s247, 4
          %s249 = scalar_lea.vmem [#allocation2], %s248
          %251 = vsyncadd %s246, 0
          %s252 = smul.addr %s20, 4
          %s253 = scalar_lea.hbm %s0, %s252
          %s255 = sshll.u32 %s253, 4
          %s256 = int_to_ptr.hbm [resolvable:$true] %s255
          %s257 = sshll.u32 %s249, 4
          %s258 = int_to_ptr.vmem [resolvable:$true] %s257
          %260 = dma.hbm_to_vmem [thread:$0]  %s256, 64, %s258, %s246
        $region40: #{tpu_custom_call.1} parent=35 // pred_fallthru
          _
      $region36: #{tpu_custom_call.1} parent=5 // pred_fallthru
        _
      %p261 = scmp.le.s32.totalorder 1, %s20
      %p262 = scmp.lt.s32.totalorder %s20, 3
      %p263 = pnand %p261, %p262
      %p264 = pneg %p263
      // Predicated region
      $region41: #{tpu_custom_call.1} parent=5 // pred_check
        _
      $region42: #{tpu_custom_call.1} parent=5 // pred_check_branch
        %266 = sbr.rel (%p263) target = $region44
      $region43: #{tpu_custom_call.1} parent=5 // pred_region
        %s267 = ssub.s32 %s20, 1
        %s268 = sand.u32 %s33, 1
        %s269 = scalar_lea.sflag [#allocation3], %s268
        %s270 = sand.u32 %s33, 1
        %s271 = smul.addr %s270, 4
        %s272 = scalar_lea.vmem [#allocation2], %s271
        // Predicated region
        $region45: #{tpu_custom_call.1} parent=43 // pred_check
          %p273 = pneg %p46
        $region46: #{tpu_custom_call.1} parent=43 // pred_check_branch
          %275 = sbr.rel (%p273) target = $region48
        $region47: #{tpu_custom_call.1} parent=43 // pred_region
          %277 = dma.done %s269, 64
        $region48: #{tpu_custom_call.1} parent=43 // pred_fallthru
          _
        // Predicated region
        $region49: #{tpu_custom_call.1} parent=43 // pred_check
          %p278 = pneg %p67
        $region50: #{tpu_custom_call.1} parent=43 // pred_check_branch
          %280 = sbr.rel (%p278) target = $region52
        $region51: #{tpu_custom_call.1} parent=43 // pred_region
          %282 = dma.done [#allocation6], 128
        $region52: #{tpu_custom_call.1} parent=43 // pred_fallthru
          _
        // Predicated region
        $region53: #{tpu_custom_call.1} parent=43 // pred_check
          %p283 = pneg %p88
        $region54: #{tpu_custom_call.1} parent=43 // pred_check_branch
          %285 = sbr.rel (%p283) target = $region56
        $region55: #{tpu_custom_call.1} parent=43 // pred_region
          %287 = dma.done [#allocation6], 256
        $region56: #{tpu_custom_call.1} parent=43 // pred_fallthru
          _
        // Predicated region
        $region57: #{tpu_custom_call.1} parent=43 // pred_check
          %p288 = pneg %p130
        $region58: #{tpu_custom_call.1} parent=43 // pred_check_branch
          %290 = sbr.rel (%p288) target = $region60
        $region59: #{tpu_custom_call.1} parent=43 // pred_region
          %292 = dma.done [#allocation9], 256
        $region60: #{tpu_custom_call.1} parent=43 // pred_fallthru
          _
        %s293 = sand.u32 %s33, 1
        %s294 = scalar_lea.sflag [#allocation3], %s293
        %s295 = sand.u32 %s33, 1
        %s296 = smul.addr %s295, 4
        %s297 = scalar_lea.vmem [#allocation2], %s296
        %p298 = pneg %p46
        %p299 = pneg %p43
        %p300 = pneg %p67
        %p301 = pneg %p64
        %p302 = pneg %p88
        %p303 = pneg %p85
        %p304 = pneg %p109
        %p305 = pneg %p106
        %p306 = pneg %p130
        %p307 = pneg %p127
        %p308 = pneg %p151
        %p309 = pneg %p148
        %p310 = pneg %p177
        %p311 = pneg %p174
        %s312 = sand.u32 %s164, 1
        %s313 = scalar_lea.sflag [#allocation4], %s312
        %s314 = sand.u32 %s164, 1
        %s315 = smul.addr %s314, 8
        %s316 = scalar_lea.vmem [#allocation10], %s315
        %v318 = vld [vmem:[%s272] sm:$0xf]
        %v319 = vld [vmem:[#allocation7] sm:$0xf]
        %v320 = vld [vmem:[#allocation7 + $0x4] sm:$0xf]
        %v321 = vld [vmem:[#allocation7 + $0x8] sm:$0xf]
        %v322 = vld [vmem:[#allocation7 + $0xc] sm:$0xf]
        %v323 = vld [vmem:[%s3] sm:$0x1]
        %v325 = vperm.slane %v323, 0
        %v331 = vunpack.c.l.b16 %v319
        %v332 = vunpack.c.l.b16 %v320
        %v333 = vunpack.c.l.b16 %v321
        %v334 = vunpack.c.l.b16 %v322
        %v335 = vpack.c.b16 %v332, %v331
        %v336 = vpack.c.b16 %v334, %v333
        %vm339 = vcmask 261120
        %v341 = vsel %vm339, %v318, 0
        %343 = vmatpush.bf16.msra.mxu0 0
        %344 = vmatpush.bf16.msra.mxu0 0
        %345 = vmatpush.bf16.msra.mxu0 0
        %346 = vmatpush.bf16.msra.mxu0 0
        %347 = vmatpush.bf16.msra.mxu0 0
        %348 = vmatpush.bf16.msra.mxu0 0
        %349 = vmatpush.bf16.msra.mxu0 %v336
        %350 = vmatpush.bf16.msra.mxu0 %v335
        %351 = vmatmul.bf16.gmra.mxu0 %v341
        %v352 = vpop.f32.mrf.mxu0
        %v353 = vadd.f32 %v325, %v352
        %v354 = vpop.f32.mrf.mxu0
        %355 = vdwg.mxu0
        %v356 = vmul.f32 %v353, 0.35355338
        %358 = vrot.lane.b32.xlu0 %v356, 120
        %v359 = vpop.permute.xlu0 %358
        %361 = vrot.lane.b32.xlu0 %v356, 112
        %v362 = vpop.permute.xlu0 %361
        %364 = vrot.lane.b32.xlu0 %v356, 104
        %v365 = vpop.permute.xlu0 %364
        %v367 = vrot.slane %v362, 4
        %vm368 = vcmask 1047556
        %v369 = vsel %vm368, %v367, %v356
        %v370 = vrot.slane %v356, 4
        %v371 = vsel %vm368, %v362, %v370
        %v373 = vunpack.c.l.s4 1983009808
        %v374 = vunpack.c.0.s8 %v373
        %v375 = vperm.slane %v369, %v374
        %v377 = vunpack.c.l.s4 1983009808
        %v378 = vunpack.c.0.s8 %v377
        %v379 = vperm.slane %v371, %v378
        %v380 = vrot.slane %v365, 4
        %v381 = vsel %vm368, %v380, %v359
        %v382 = vrot.slane %v359, 4
        %v383 = vsel %vm368, %v365, %v382
        %v385 = vunpack.c.l.s4 1983009808
        %v386 = vunpack.c.0.s8 %v385
        %v387 = vperm.slane %v381, %v386
        %v389 = vunpack.c.l.s4 1983009808
        %v390 = vunpack.c.0.s8 %v389
        %v391 = vperm.slane %v383, %v390
        %v392 = vrot.slane %v387, 4
        %v393 = vsel %vm368, %v392, %v375
        %v394 = vrot.slane %v375, 4
        %v395 = vsel %vm368, %v387, %v394
        %v397 = vunpack.c.l.s4 1934713408
        %v398 = vunpack.c.0.s8 %v397
        %v399 = vperm.slane %v393, %v398
        %v401 = vunpack.c.l.s4 1934713408
        %v402 = vunpack.c.0.s8 %v401
        %v403 = vperm.slane %v395, %v402
        %v404 = vrot.slane %v391, 4
        %v405 = vsel %vm368, %v404, %v379
        %v406 = vrot.slane %v379, 4
        %v407 = vsel %vm368, %v391, %v406
        %v409 = vunpack.c.l.s4 1934713408
        %v410 = vunpack.c.0.s8 %v409
        %v411 = vperm.slane %v405, %v410
        %v413 = vunpack.c.l.s4 1934713408
        %v414 = vunpack.c.0.s8 %v413
        %v415 = vperm.slane %v407, %v414
        %v416 = vrot.slane %v399, 4
        %v417 = vsel %vm368, 0.0, %v416
        %v418 = vrot.slane %v403, 4
        %v419 = vsel %vm368, 0.0, %v418
        %v420 = vrot.slane %v411, 4
        %v421 = vsel %vm368, 0.0, %v420
        %v422 = vrot.slane %v415, 4
        %v423 = vsel %vm368, 0.0, %v422
        %v424 = vsel %vm368, %v418, %v399
        %v426 = vunpack.c.l.s4 1983009808
        %v427 = vunpack.c.0.s8 %v426
        %v428 = vperm.slane %v424, %v427
        %v429 = vrot.slane %v419, 4
        %v430 = vsel %vm368, %v429, %v417
        %v432 = vunpack.c.l.s4 1983009808
        %v433 = vunpack.c.0.s8 %v432
        %v434 = vperm.slane %v430, %v433
        %v435 = vsel %vm368, %v422, %v411
        %v437 = vunpack.c.l.s4 1983009808
        %v438 = vunpack.c.0.s8 %v437
        %v439 = vperm.slane %v435, %v438
        %v440 = vrot.slane %v423, 4
        %v441 = vsel %vm368, %v440, %v421
        %v443 = vunpack.c.l.s4 1983009808
        %v444 = vunpack.c.0.s8 %v443
        %v445 = vperm.slane %v441, %v444
        %v446 = vrot.slane %v434, 4
        %v447 = vsel %vm368, %v446, %v428
        %v448 = vrot.slane %v428, 4
        %v449 = vsel %vm368, %v434, %v448
        %v451 = vunpack.c.l.s4 1934713408
        %v452 = vunpack.c.0.s8 %v451
        %v453 = vperm.slane %v447, %v452
        %v455 = vunpack.c.l.s4 1934713408
        %v456 = vunpack.c.0.s8 %v455
        %v457 = vperm.slane %v449, %v456
        %v458 = vrot.slane %v445, 4
        %v459 = vsel %vm368, %v458, %v439
        %v460 = vrot.slane %v439, 4
        %v461 = vsel %vm368, %v445, %v460
        %v463 = vunpack.c.l.s4 1934713408
        %v464 = vunpack.c.0.s8 %v463
        %v465 = vperm.slane %v459, %v464
        %v467 = vunpack.c.l.s4 1934713408
        %v468 = vunpack.c.0.s8 %v467
        %v469 = vperm.slane %v461, %v468
        %v470 = vrot.slane %v465, 4
        %v471 = vsel %vm368, %v470, %v453
        %v472 = vrot.slane %v453, 4
        %v473 = vsel %vm368, %v465, %v472
        %v474 = vrot.slane %v469, 4
        %v475 = vsel %vm368, %v474, %v457
        %v476 = vrot.slane %v457, 4
        %v477 = vsel %vm368, %v469, %v476
        %v478 = vpack.c.bf16 %v471, %v471
        %v479 = vpack.c.bf16 %v473, %v473
        %v480 = vpack.c.bf16 %v475, %v475
        %v481 = vpack.c.bf16 %v477, %v477
        %483 = vrot.lane.b32.xlu0 %v353, 120
        %v484 = vpop.permute.xlu0 %483
        %485 = vrot.lane.b32.xlu0 %v353, 112
        %v486 = vpop.permute.xlu0 %485
        %487 = vrot.lane.b32.xlu0 %v353, 104
        %v488 = vpop.permute.xlu0 %487
        %489 = vrot.lane.b32.xlu0 %v353, 96
        %v490 = vpop.permute.xlu0 %489
        %491 = vrot.lane.b32.xlu0 %v484, 96
        %v492 = vpop.permute.xlu0 %491
        %493 = vrot.lane.b32.xlu0 %v486, 96
        %v494 = vpop.permute.xlu0 %493
        %495 = vrot.lane.b32.xlu0 %v488, 96
        %v496 = vpop.permute.xlu0 %495
        %v501 = vrot.slane %v494, 4
        %v502 = vsel %vm368, %v501, %v490
        %v503 = vrot.slane %v490, 4
        %v504 = vsel %vm368, %v494, %v503
        %v506 = vunpack.c.l.s4 1983009808
        %v507 = vunpack.c.0.s8 %v506
        %v508 = vperm.slane %v502, %v507
        %v510 = vunpack.c.l.s4 1983009808
        %v511 = vunpack.c.0.s8 %v510
        %v512 = vperm.slane %v504, %v511
        %v513 = vrot.slane %v496, 4
        %v514 = vsel %vm368, %v513, %v492
        %v515 = vrot.slane %v492, 4
        %v516 = vsel %vm368, %v496, %v515
        %v518 = vunpack.c.l.s4 1983009808
        %v519 = vunpack.c.0.s8 %v518
        %v520 = vperm.slane %v514, %v519
        %v522 = vunpack.c.l.s4 1983009808
        %v523 = vunpack.c.0.s8 %v522
        %v524 = vperm.slane %v516, %v523
        %v525 = vrot.slane %v520, 4
        %v526 = vsel %vm368, %v525, %v508
        %v527 = vrot.slane %v508, 4
        %v528 = vsel %vm368, %v520, %v527
        %v530 = vunpack.c.l.s4 1934713408
        %v531 = vunpack.c.0.s8 %v530
        %v532 = vperm.slane %v526, %v531
        %v534 = vunpack.c.l.s4 1934713408
        %v535 = vunpack.c.0.s8 %v534
        %v536 = vperm.slane %v528, %v535
        %v537 = vrot.slane %v524, 4
        %v538 = vsel %vm368, %v537, %v512
        %v539 = vrot.slane %v512, 4
        %v540 = vsel %vm368, %v524, %v539
        %v542 = vunpack.c.l.s4 1934713408
        %v543 = vunpack.c.0.s8 %v542
        %v544 = vperm.slane %v538, %v543
        %v546 = vunpack.c.l.s4 1934713408
        %v547 = vunpack.c.0.s8 %v546
        %v548 = vperm.slane %v540, %v547
        %v549 = vrot.slane %v532, 4
        %v550 = vsel %vm368, 0.0, %v549
        %v551 = vrot.slane %v536, 4
        %v552 = vsel %vm368, 0.0, %v551
        %v553 = vrot.slane %v544, 4
        %v554 = vsel %vm368, 0.0, %v553
        %v555 = vrot.slane %v548, 4
        %v556 = vsel %vm368, 0.0, %v555
        %v557 = vsel %vm368, %v551, %v532
        %v559 = vunpack.c.l.s4 1983009808
        %v560 = vunpack.c.0.s8 %v559
        %v561 = vperm.slane %v557, %v560
        %v562 = vrot.slane %v552, 4
        %v563 = vsel %vm368, %v562, %v550
        %v565 = vunpack.c.l.s4 1983009808
        %v566 = vunpack.c.0.s8 %v565
        %v567 = vperm.slane %v563, %v566
        %v568 = vsel %vm368, %v555, %v544
        %v570 = vunpack.c.l.s4 1983009808
        %v571 = vunpack.c.0.s8 %v570
        %v572 = vperm.slane %v568, %v571
        %v573 = vrot.slane %v556, 4
        %v574 = vsel %vm368, %v573, %v554
        %v576 = vunpack.c.l.s4 1983009808
        %v577 = vunpack.c.0.s8 %v576
        %v578 = vperm.slane %v574, %v577
        %v579 = vrot.slane %v567, 4
        %v580 = vsel %vm368, %v579, %v561
        %v581 = vrot.slane %v561, 4
        %v582 = vsel %vm368, %v567, %v581
        %v584 = vunpack.c.l.s4 1934713408
        %v585 = vunpack.c.0.s8 %v584
        %v586 = vperm.slane %v580, %v585
        %v588 = vunpack.c.l.s4 1934713408
        %v589 = vunpack.c.0.s8 %v588
        %v590 = vperm.slane %v582, %v589
        %v591 = vrot.slane %v578, 4
        %v592 = vsel %vm368, %v591, %v572
        %v593 = vrot.slane %v572, 4
        %v594 = vsel %vm368, %v578, %v593
        %v596 = vunpack.c.l.s4 1934713408
        %v597 = vunpack.c.0.s8 %v596
        %v598 = vperm.slane %v592, %v597
        %v600 = vunpack.c.l.s4 1934713408
        %v601 = vunpack.c.0.s8 %v600
        %v602 = vperm.slane %v594, %v601
        %v603 = vrot.slane %v598, 4
        %v604 = vsel %vm368, %v603, %v586
        %v605 = vrot.slane %v586, 4
        %v606 = vsel %vm368, %v598, %v605
        %v607 = vrot.slane %v602, 4
        %v608 = vsel %vm368, %v607, %v590
        %v609 = vrot.slane %v590, 4
        %v610 = vsel %vm368, %v602, %v609
        %v611 = vpack.c.bf16 %v604, %v604
        %v612 = vpack.c.bf16 %v606, %v606
        %v613 = vpack.c.bf16 %v608, %v608
        %v614 = vpack.c.bf16 %v610, %v610
        %615 = vrot.lane.b32.xlu0 %v353, 64
        %v616 = vpop.permute.xlu0 %615
        %617 = vrot.lane.b32.xlu0 %v484, 64
        %v618 = vpop.permute.xlu0 %617
        %619 = vrot.lane.b32.xlu0 %v486, 64
        %v620 = vpop.permute.xlu0 %619
        %621 = vrot.lane.b32.xlu0 %v488, 64
        %v622 = vpop.permute.xlu0 %621
        %v627 = vrot.slane %v620, 4
        %v628 = vsel %vm368, %v627, %v616
        %v629 = vrot.slane %v616, 4
        %v630 = vsel %vm368, %v620, %v629
        %v632 = vunpack.c.l.s4 1983009808
        %v633 = vunpack.c.0.s8 %v632
        %v634 = vperm.slane %v628, %v633
        %v636 = vunpack.c.l.s4 1983009808
        %v637 = vunpack.c.0.s8 %v636
        %v638 = vperm.slane %v630, %v637
        %v639 = vrot.slane %v622, 4
        %v640 = vsel %vm368, %v639, %v618
        %v641 = vrot.slane %v618, 4
        %v642 = vsel %vm368, %v622, %v641
        %v644 = vunpack.c.l.s4 1983009808
        %v645 = vunpack.c.0.s8 %v644
        %v646 = vperm.slane %v640, %v645
        %v648 = vunpack.c.l.s4 1983009808
        %v649 = vunpack.c.0.s8 %v648
        %v650 = vperm.slane %v642, %v649
        %v651 = vrot.slane %v646, 4
        %v652 = vsel %vm368, %v651, %v634
        %v653 = vrot.slane %v634, 4
        %v654 = vsel %vm368, %v646, %v653
        %v656 = vunpack.c.l.s4 1934713408
        %v657 = vunpack.c.0.s8 %v656
        %v658 = vperm.slane %v652, %v657
        %v660 = vunpack.c.l.s4 1934713408
        %v661 = vunpack.c.0.s8 %v660
        %v662 = vperm.slane %v654, %v661
        %v663 = vrot.slane %v650, 4
        %v664 = vsel %vm368, %v663, %v638
        %v665 = vrot.slane %v638, 4
        %v666 = vsel %vm368, %v650, %v665
        %v668 = vunpack.c.l.s4 1934713408
        %v669 = vunpack.c.0.s8 %v668
        %v670 = vperm.slane %v664, %v669
        %v672 = vunpack.c.l.s4 1934713408
        %v673 = vunpack.c.0.s8 %v672
        %v674 = vperm.slane %v666, %v673
        %v675 = vrot.slane %v658, 4
        %v676 = vsel %vm368, 0.0, %v675
        %v677 = vrot.slane %v662, 4
        %v678 = vsel %vm368, 0.0, %v677
        %v679 = vrot.slane %v670, 4
        %v680 = vsel %vm368, 0.0, %v679
        %v681 = vrot.slane %v674, 4
        %v682 = vsel %vm368, 0.0, %v681
        %v683 = vsel %vm368, %v677, %v658
        %v685 = vunpack.c.l.s4 1983009808
        %v686 = vunpack.c.0.s8 %v685
        %v687 = vperm.slane %v683, %v686
        %v688 = vrot.slane %v678, 4
        %v689 = vsel %vm368, %v688, %v676
        %v691 = vunpack.c.l.s4 1983009808
        %v692 = vunpack.c.0.s8 %v691
        %v693 = vperm.slane %v689, %v692
        %v694 = vsel %vm368, %v681, %v670
        %v696 = vunpack.c.l.s4 1983009808
        %v697 = vunpack.c.0.s8 %v696
        %v698 = vperm.slane %v694, %v697
        %v699 = vrot.slane %v682, 4
        %v700 = vsel %vm368, %v699, %v680
        %v702 = vunpack.c.l.s4 1983009808
        %v703 = vunpack.c.0.s8 %v702
        %v704 = vperm.slane %v700, %v703
        %v705 = vrot.slane %v693, 4
        %v706 = vsel %vm368, %v705, %v687
        %v707 = vrot.slane %v687, 4
        %v708 = vsel %vm368, %v693, %v707
        %v710 = vunpack.c.l.s4 1934713408
        %v711 = vunpack.c.0.s8 %v710
        %v712 = vperm.slane %v706, %v711
        %v714 = vunpack.c.l.s4 1934713408
        %v715 = vunpack.c.0.s8 %v714
        %v716 = vperm.slane %v708, %v715
        %v717 = vrot.slane %v704, 4
        %v718 = vsel %vm368, %v717, %v698
        %v719 = vrot.slane %v698, 4
        %v720 = vsel %vm368, %v704, %v719
        %v722 = vunpack.c.l.s4 1934713408
        %v723 = vunpack.c.0.s8 %v722
        %v724 = vperm.slane %v718, %v723
        %v726 = vunpack.c.l.s4 1934713408
        %v727 = vunpack.c.0.s8 %v726
        %v728 = vperm.slane %v720, %v727
        %v729 = vrot.slane %v724, 4
        %v730 = vsel %vm368, %v729, %v712
        %v731 = vrot.slane %v712, 4
        %v732 = vsel %vm368, %v724, %v731
        %v733 = vrot.slane %v728, 4
        %v734 = vsel %vm368, %v733, %v716
        %v735 = vrot.slane %v716, 4
        %v736 = vsel %vm368, %v728, %v735
        %v737 = vpack.c.bf16 %v730, %v730
        %v738 = vpack.c.bf16 %v732, %v732
        %v739 = vpack.c.bf16 %v734, %v734
        %v740 = vpack.c.bf16 %v736, %v736
        %v741 = vld [vmem:[#allocation5] sm:$0xff]
        %vm742 = vcmask 64512
        %v744 = vsel %vm742, %v478, 0
        %v747 = vsel %vm742, %v611, 0
        %749 = vmatpush.bf16.xpose.msra.mxu0 0
        %750 = vmatpush.bf16.xpose.msra.mxu0 0
        %751 = vmatpush.bf16.xpose.msra.mxu0 0
        %752 = vmatpush.bf16.xpose.msra.mxu0 0
        %753 = vmatpush.bf16.xpose.msra.mxu0 0
        %754 = vmatpush.bf16.xpose.msra.mxu0 0
        %755 = vmatpush.bf16.xpose.msra.mxu0 0
        %756 = vmatpush.bf16.xpose.msra.mxu0 %v747
        %757 = vmatmul.bf16.gmra.mxu0 %v744
        %v758 = vpop.f32.mrf.mxu0
        %v759 = vadd.f32 %v741, %v758
        %v760 = vpop.f32.mrf.mxu0
        %761 = vdwg.mxu0
        %v763 = vsel %vm742, %v479, 0
        %v766 = vsel %vm742, %v612, 0
        %768 = vmatpush.bf16.xpose.msra.mxu0 0
        %769 = vmatpush.bf16.xpose.msra.mxu0 0
        %770 = vmatpush.bf16.xpose.msra.mxu0 0
        %771 = vmatpush.bf16.xpose.msra.mxu0 0
        %772 = vmatpush.bf16.xpose.msra.mxu0 0
        %773 = vmatpush.bf16.xpose.msra.mxu0 0
        %774 = vmatpush.bf16.xpose.msra.mxu0 0
        %775 = vmatpush.bf16.xpose.msra.mxu0 %v766
        %776 = vmatmul.bf16.gmra.mxu0 %v763
        %v777 = vpop.f32.mrf.mxu0
        %v778 = vadd.f32 %v741, %v777
        %v779 = vpop.f32.mrf.mxu0
        %780 = vdwg.mxu0
        %v782 = vsel %vm742, %v480, 0
        %v785 = vsel %vm742, %v613, 0
        %787 = vmatpush.bf16.xpose.msra.mxu0 0
        %788 = vmatpush.bf16.xpose.msra.mxu0 0
        %789 = vmatpush.bf16.xpose.msra.mxu0 0
        %790 = vmatpush.bf16.xpose.msra.mxu0 0
        %791 = vmatpush.bf16.xpose.msra.mxu0 0
        %792 = vmatpush.bf16.xpose.msra.mxu0 0
        %793 = vmatpush.bf16.xpose.msra.mxu0 0
        %794 = vmatpush.bf16.xpose.msra.mxu0 %v785
        %795 = vmatmul.bf16.gmra.mxu0 %v782
        %v796 = vpop.f32.mrf.mxu0
        %v797 = vadd.f32 %v741, %v796
        %v798 = vpop.f32.mrf.mxu0
        %799 = vdwg.mxu0
        %v801 = vsel %vm742, %v481, 0
        %v804 = vsel %vm742, %v614, 0
        %806 = vmatpush.bf16.xpose.msra.mxu0 0
        %807 = vmatpush.bf16.xpose.msra.mxu0 0
        %808 = vmatpush.bf16.xpose.msra.mxu0 0
        %809 = vmatpush.bf16.xpose.msra.mxu0 0
        %810 = vmatpush.bf16.xpose.msra.mxu0 0
        %811 = vmatpush.bf16.xpose.msra.mxu0 0
        %812 = vmatpush.bf16.xpose.msra.mxu0 0
        %813 = vmatpush.bf16.xpose.msra.mxu0 %v804
        %814 = vmatmul.bf16.gmra.mxu0 %v801
        %v815 = vpop.f32.mrf.mxu0
        %v816 = vadd.f32 %v741, %v815
        %v817 = vpop.f32.mrf.mxu0
        %818 = vdwg.mxu0
        %v819 = vsel %vm742, %v759, -inf
        %820 = vmax.xlane.f32.xlu0 %v819
        %v821 = vpop.xlane.xlu0 %820
        %v822 = vsel %vm742, %v778, -inf
        %823 = vmax.xlane.f32.xlu0 %v822
        %v824 = vpop.xlane.xlu0 %823
        %v825 = vsel %vm742, %v797, -inf
        %826 = vmax.xlane.f32.xlu0 %v825
        %v827 = vpop.xlane.xlu0 %826
        %v828 = vsel %vm742, %v816, -inf
        %829 = vmax.xlane.f32.xlu0 %v828
        %v830 = vpop.xlane.xlu0 %829
        %v831 = vsub.f32 %v759, %v821
        %v832 = vsub.f32 %v778, %v824
        %v833 = vsub.f32 %v797, %v827
        %v834 = vsub.f32 %v816, %v830
        %v835 = vmul.f32 %v831, 1.442695
        %v836 = vpow.pop %v835
        %v837 = vmul.f32 %v832, 1.442695
        %v838 = vpow.pop %v837
        %v839 = vmul.f32 %v833, 1.442695
        %v840 = vpow.pop %v839
        %v841 = vmul.f32 %v834, 1.442695
        %v842 = vpow.pop %v841
        %v843 = vsel %vm742, %v836, 0.0
        %844 = vadd.xlane.f32.xlu0 %v843
        %v845 = vpop.xlane.xlu0 %844
        %v846 = vsel %vm742, %v838, 0.0
        %847 = vadd.xlane.f32.xlu0 %v846
        %v848 = vpop.xlane.xlu0 %847
        %v849 = vsel %vm742, %v840, 0.0
        %850 = vadd.xlane.f32.xlu0 %v849
        %v851 = vpop.xlane.xlu0 %850
        %v852 = vsel %vm742, %v842, 0.0
        %853 = vadd.xlane.f32.xlu0 %v852
        %v854 = vpop.xlane.xlu0 %853
        %v855 = vrcp.pop %v845
        %v856 = vrcp.pop %v848
        %v857 = vrcp.pop %v851
        %v858 = vrcp.pop %v854
        %v859 = vpack.c.bf16 %v836, %v836
        %v860 = vpack.c.bf16 %v838, %v838
        %v861 = vpack.c.bf16 %v840, %v840
        %v862 = vpack.c.bf16 %v842, %v842
        %v864 = vsel %vm742, %v859, 0
        %vm866 = vcmask 1043456
        %v868 = vsel %vm866, %v737, 0
        %870 = vmatpush.bf16.msra.mxu0 0
        %871 = vmatpush.bf16.msra.mxu0 0
        %872 = vmatpush.bf16.msra.mxu0 0
        %873 = vmatpush.bf16.msra.mxu0 0
        %874 = vmatpush.bf16.msra.mxu0 0
        %875 = vmatpush.bf16.msra.mxu0 0
        %876 = vmatpush.bf16.msra.mxu0 0
        %877 = vmatpush.bf16.msra.mxu0 %v868
        %878 = vmatmul.bf16.gmra.mxu0 %v864
        %v879 = vpop.f32.mrf.mxu0
        %v880 = vadd.f32 0.0, %v879
        %v881 = vpop.f32.mrf.mxu0
        %882 = vdwg.mxu0
        %v884 = vsel %vm742, %v860, 0
        %v887 = vsel %vm866, %v738, 0
        %889 = vmatpush.bf16.msra.mxu0 0
        %890 = vmatpush.bf16.msra.mxu0 0
        %891 = vmatpush.bf16.msra.mxu0 0
        %892 = vmatpush.bf16.msra.mxu0 0
        %893 = vmatpush.bf16.msra.mxu0 0
        %894 = vmatpush.bf16.msra.mxu0 0
        %895 = vmatpush.bf16.msra.mxu0 0
        %896 = vmatpush.bf16.msra.mxu0 %v887
        %897 = vmatmul.bf16.gmra.mxu0 %v884
        %v898 = vpop.f32.mrf.mxu0
        %v899 = vadd.f32 0.0, %v898
        %v900 = vpop.f32.mrf.mxu0
        %901 = vdwg.mxu0
        %v903 = vsel %vm742, %v861, 0
        %v906 = vsel %vm866, %v739, 0
        %908 = vmatpush.bf16.msra.mxu0 0
        %909 = vmatpush.bf16.msra.mxu0 0
        %910 = vmatpush.bf16.msra.mxu0 0
        %911 = vmatpush.bf16.msra.mxu0 0
        %912 = vmatpush.bf16.msra.mxu0 0
        %913 = vmatpush.bf16.msra.mxu0 0
        %914 = vmatpush.bf16.msra.mxu0 0
        %915 = vmatpush.bf16.msra.mxu0 %v906
        %916 = vmatmul.bf16.gmra.mxu0 %v903
        %v917 = vpop.f32.mrf.mxu0
        %v918 = vadd.f32 0.0, %v917
        %v919 = vpop.f32.mrf.mxu0
        %920 = vdwg.mxu0
        %v922 = vsel %vm742, %v862, 0
        %v925 = vsel %vm866, %v740, 0
        %927 = vmatpush.bf16.msra.mxu0 0
        %928 = vmatpush.bf16.msra.mxu0 0
        %929 = vmatpush.bf16.msra.mxu0 0
        %930 = vmatpush.bf16.msra.mxu0 0
        %931 = vmatpush.bf16.msra.mxu0 0
        %932 = vmatpush.bf16.msra.mxu0 0
        %933 = vmatpush.bf16.msra.mxu0 0
        %934 = vmatpush.bf16.msra.mxu0 %v925
        %935 = vmatmul.bf16.gmra.mxu0 %v922
        %v936 = vpop.f32.mrf.mxu0
        %v937 = vadd.f32 0.0, %v936
        %v938 = vpop.f32.mrf.mxu0
        %939 = vdwg.mxu0
        %v940 = vmul.f32 %v880, %v855
        %v941 = vmul.f32 %v899, %v856
        %v942 = vmul.f32 %v918, %v857
        %v943 = vmul.f32 %v937, %v858
        %v944 = vrot.slane %v942, 4
        %v945 = vsel %vm368, %v944, %v940
        %v946 = vrot.slane %v940, 4
        %v947 = vsel %vm368, %v942, %v946
        %v949 = vunpack.c.l.s4 1983009808
        %v950 = vunpack.c.0.s8 %v949
        %v951 = vperm.slane %v945, %v950
        %v953 = vunpack.c.l.s4 1983009808
        %v954 = vunpack.c.0.s8 %v953
        %v955 = vperm.slane %v947, %v954
        %v956 = vrot.slane %v943, 4
        %v957 = vsel %vm368, %v956, %v941
        %v958 = vrot.slane %v941, 4
        %v959 = vsel %vm368, %v943, %v958
        %v961 = vunpack.c.l.s4 1983009808
        %v962 = vunpack.c.0.s8 %v961
        %v963 = vperm.slane %v957, %v962
        %v965 = vunpack.c.l.s4 1983009808
        %v966 = vunpack.c.0.s8 %v965
        %v967 = vperm.slane %v959, %v966
        %v968 = vrot.slane %v963, 4
        %v969 = vsel %vm368, %v968, %v951
        %v970 = vrot.slane %v951, 4
        %v971 = vsel %vm368, %v963, %v970
        %v973 = vunpack.c.l.s4 1934713408
        %v974 = vunpack.c.0.s8 %v973
        %v975 = vperm.slane %v969, %v974
        %v977 = vunpack.c.l.s4 1934713408
        %v978 = vunpack.c.0.s8 %v977
        %v979 = vperm.slane %v971, %v978
        %v980 = vrot.slane %v967, 4
        %v981 = vsel %vm368, %v980, %v955
        %v982 = vrot.slane %v955, 4
        %v983 = vsel %vm368, %v967, %v982
        %v985 = vunpack.c.l.s4 1934713408
        %v986 = vunpack.c.0.s8 %v985
        %v987 = vperm.slane %v981, %v986
        %v989 = vunpack.c.l.s4 1934713408
        %v990 = vunpack.c.0.s8 %v989
        %v991 = vperm.slane %v983, %v990
        %v992 = vrot.slane %v975, 4
        %v993 = vsel %vm368, 0.0, %v992
        %v994 = vrot.slane %v979, 4
        %v995 = vsel %vm368, 0.0, %v994
        %v996 = vrot.slane %v987, 4
        %v997 = vsel %vm368, 0.0, %v996
        %v998 = vrot.slane %v991, 4
        %v999 = vsel %vm368, 0.0, %v998
        %v1000 = vsel %vm368, %v994, %v975
        %v1002 = vunpack.c.l.s4 1983009808
        %v1003 = vunpack.c.0.s8 %v1002
        %v1004 = vperm.slane %v1000, %v1003
        %v1005 = vrot.slane %v995, 4
        %v1006 = vsel %vm368, %v1005, %v993
        %v1008 = vunpack.c.l.s4 1983009808
        %v1009 = vunpack.c.0.s8 %v1008
        %v1010 = vperm.slane %v1006, %v1009
        %v1011 = vsel %vm368, %v998, %v987
        %v1013 = vunpack.c.l.s4 1983009808
        %v1014 = vunpack.c.0.s8 %v1013
        %v1015 = vperm.slane %v1011, %v1014
        %v1016 = vrot.slane %v999, 4
        %v1017 = vsel %vm368, %v1016, %v997
        %v1019 = vunpack.c.l.s4 1983009808
        %v1020 = vunpack.c.0.s8 %v1019
        %v1021 = vperm.slane %v1017, %v1020
        %v1022 = vrot.slane %v1010, 4
        %v1023 = vsel %vm368, %v1022, %v1004
        %v1024 = vrot.slane %v1004, 4
        %v1025 = vsel %vm368, %v1010, %v1024
        %v1027 = vunpack.c.l.s4 1934713408
        %v1028 = vunpack.c.0.s8 %v1027
        %v1029 = vperm.slane %v1023, %v1028
        %v1031 = vunpack.c.l.s4 1934713408
        %v1032 = vunpack.c.0.s8 %v1031
        %v1033 = vperm.slane %v1025, %v1032
        %v1034 = vrot.slane %v1021, 4
        %v1035 = vsel %vm368, %v1034, %v1015
        %v1036 = vrot.slane %v1015, 4
        %v1037 = vsel %vm368, %v1021, %v1036
        %v1039 = vunpack.c.l.s4 1934713408
        %v1040 = vunpack.c.0.s8 %v1039
        %v1041 = vperm.slane %v1035, %v1040
        %v1043 = vunpack.c.l.s4 1934713408
        %v1044 = vunpack.c.0.s8 %v1043
        %v1045 = vperm.slane %v1037, %v1044
        %v1046 = vrot.slane %v1041, 4
        %v1047 = vsel %vm368, %v1046, %v1029
        %v1048 = vrot.slane %v1029, 4
        %v1049 = vsel %vm368, %v1041, %v1048
        %v1050 = vrot.slane %v1045, 4
        %v1051 = vsel %vm368, %v1050, %v1033
        %v1052 = vrot.slane %v1033, 4
        %v1053 = vsel %vm368, %v1045, %v1052
        %1055 = vrot.lane.b32.xlu0 %v1049, 8
        %v1056 = vpop.permute.xlu0 %1055
        %1059 = vrot.lane.b32.xlu0 %v1051, 16
        %v1060 = vpop.permute.xlu0 %1059
        %1063 = vrot.lane.b32.xlu0 %v1053, 24
        %v1064 = vpop.permute.xlu0 %1063
        %v1066 = vsel %vm742, %v1047, %v1056
        %vm1067 = vcmask 130048
        %v1068 = vsel %vm1067, %v1066, %v1060
        %vm1069 = vcmask 195584
        %v1070 = vsel %vm1069, %v1068, %v1064
        %v1071 = vpack.c.bf16 %v1070, %v1070
        %v1072 = vld [vmem:[#allocation8] sm:$0xf]
        %v1073 = vld [vmem:[#allocation8 + $0x4] sm:$0xf]
        %v1074 = vld [vmem:[#allocation8 + $0x8] sm:$0xf]
        %v1075 = vld [vmem:[#allocation8 + $0xc] sm:$0xf]
        %v1076 = vld [vmem:[%s5] sm:$0x1]
        %v1078 = vperm.slane %v1076, 0
        %v1084 = vunpack.c.l.b16 %v1072
        %v1085 = vunpack.c.l.b16 %v1073
        %v1086 = vunpack.c.l.b16 %v1074
        %v1087 = vunpack.c.l.b16 %v1075
        %v1088 = vpack.c.b16 %v1085, %v1084
        %v1089 = vpack.c.b16 %v1087, %v1086
        %v1093 = vsel %vm339, %v1071, 0
        %1095 = vmatpush.bf16.msra.mxu0 0
        %1096 = vmatpush.bf16.msra.mxu0 0
        %1097 = vmatpush.bf16.msra.mxu0 0
        %1098 = vmatpush.bf16.msra.mxu0 0
        %1099 = vmatpush.bf16.msra.mxu0 0
        %1100 = vmatpush.bf16.msra.mxu0 0
        %1101 = vmatpush.bf16.msra.mxu0 %v1089
        %1102 = vmatpush.bf16.msra.mxu0 %v1088
        %1103 = vmatmul.bf16.gmra.mxu0 %v1093
        %v1104 = vpop.f32.mrf.mxu0
        %v1105 = vadd.f32 %v1078, %v1104
        %v1106 = vpop.f32.mrf.mxu0
        %1107 = vdwg.mxu0
        %1108 = vst.msk [vmem:[%s316] sm:$0xff] %vm339, %v1105
        %s1109 = sand.u32 %s164, 1
        %s1110 = scalar_lea.sflag [#allocation4], %s1109
        %s1111 = sand.u32 %s164, 1
        %s1112 = smul.addr %s1111, 8
        %s1113 = scalar_lea.vmem [#allocation10], %s1112
        // Predicated region
        $region61: #{tpu_custom_call.1} parent=43 // pred_check
          %p1114 = pneg %p174
        $region62: #{tpu_custom_call.1} parent=43 // pred_check_branch
          %1116 = sbr.rel (%p1114) target = $region64
        $region63: #{tpu_custom_call.1} parent=43 // pred_region
          %1118 = vsyncadd %s1110, 0
          %s1119 = smul.addr %s25, 8
          %s1120 = scalar_lea.hbm %s6, %s1119
          %s1122 = sshll.u32 %s1113, 4
          %s1123 = int_to_ptr.vmem [resolvable:$true] %s1122
          %s1124 = sshll.u32 %s1120, 4
          %s1125 = int_to_ptr.hbm [resolvable:$true] %s1124
          %1127 = dma.vmem_to_hbm [thread:$0]  %s1123, 128, %s1125, %s1110
        $region64: #{tpu_custom_call.1} parent=43 // pred_fallthru
          _
      $region44: #{tpu_custom_call.1} parent=5 // pred_fallthru
        _
      %p1128 = scmp.le.s32.totalorder 2, %s20
      // Predicated region
      $region65: #{tpu_custom_call.1} parent=5 // pred_check
        %p1129 = pneg %p1128
      $region66: #{tpu_custom_call.1} parent=5 // pred_check_branch
        %1131 = sbr.rel (%p1129) target = $region68
      $region67: #{tpu_custom_call.1} parent=5 // pred_region
        %s1132 = ssub.s32 %s20, 2
        // Predicated region
        $region69: #{tpu_custom_call.1} parent=67 // pred_check
          %p1133 = pneg %p180
        $region70: #{tpu_custom_call.1} parent=67 // pred_check_branch
          %1135 = sbr.rel (%p1133) target = $region72
        $region71: #{tpu_custom_call.1} parent=67 // pred_region
          %s1136 = sand.u32 %s165, 1
          %s1137 = scalar_lea.sflag [#allocation4], %s1136
          %s1138 = sand.u32 %s165, 1
          %s1139 = smul.addr %s1138, 8
          %s1140 = scalar_lea.vmem [#allocation10], %s1139
          %1142 = dma.done %s1137, 128
        $region72: #{tpu_custom_call.1} parent=67 // pred_fallthru
          _
      $region68: #{tpu_custom_call.1} parent=5 // pred_fallthru
        _
    $region6: #{tpu_custom_call.1} parent=1 // loop_footer
      %s24 = sadd.s32 1, %s20
    $region7: #{tpu_custom_call.1} parent=1 // loop_footer_branch
      %19 = sbr.rel target = $region3
    $region8: #{tpu_custom_call.1} parent=1 // loop_exit
      _
    %1143 = vsyncpa [#allocation3], 1
    %s1144 = scalar_lea.sflag [#allocation3], 1
    %1145 = vsyncpa %s1144, 1
    %1146 = vsyncpa [#allocation6], 1
    %1147 = vsyncpa [#allocation9], 1
    %1148 = vsyncpa [#allocation4], 1
    %s1149 = scalar_lea.sflag [#allocation4], 1
    %1150 = vsyncpa %s1149, 1

</llo_original>
